<compile_context>
chip_gen: v7x
topology: tpu7x:2x2x1
jax: 0.10.0
libtpu: 0.0.40
codegen_flags: <defaults>
</compile_context>

<pallas_src>
import functools
import math

import jax
import jax.numpy as jnp
import numpy as np
from jax import lax
from jax.experimental import pallas as pl
from jax.experimental.pallas import tpu as pltpu


# ----------------------------- Pallas kernel ------------------------------- #

def _conv_relu_pool_kernel(x_ref, w_ref, b_ref, p_ref, o_ref, lhs_ref, *,
                           cin, kh, kw, wp, mwide):
    """Fused Conv2d + bias + ReLU + AvgPool2d for one (image, pooled-row block).

    x_ref  : (Cin, rows_in*Wp)   block's input rows; channels on sublanes,
                                 fused (row, col) spatial index on lanes.
    w_ref  : (Cout, kh*kw*Cin)   conv weights, K ordered (i, j, cin). Resident.
    b_ref  : (Cout, 1)           bias. Resident.
    p_ref  : (Mwide, QP)         constant pooling matrix (0 or 1/(pkh*pkw)); also
                                 masks invalid / wrap-around conv positions. Resident.
    o_ref  : (Cout, QP)          pooled output block, QP = tile_ph*PW (q = pr*PW + pc).
    lhs_ref: (kh*kw*Cin, Mwide)  VMEM scratch holding the im2col LHS.
    """
    # Assemble the im2col LHS in VMEM from kh*kw static, contiguous lane slices.
    # LHS column m corresponds to conv position (r, c) at flat offset
    # m = r*sh*Wp + c*sw; tap (i, j) of that position lives at x flat offset
    # m + i*Wp + j, so each tap is ONE contiguous slice of the resident window.
    for i in range(kh):
        for j in range(kw):
            t = i * kw + j
            lhs_ref[t * cin:(t + 1) * cin, :] = \
                x_ref[:, i * wp + j:i * wp + j + mwide]

    # Whole-block conv as a single MXU matmul (K and M both folded), f32 accumulate.
    acts = jnp.dot(w_ref[...], lhs_ref[...], preferred_element_type=jnp.float32)
    acts = jnp.maximum(acts + b_ref[...], 0.0)           # bias + ReLU (lane-dense, VPU)

    # AvgPool2d (+ masking of invalid columns) as one small MXU matmul.
    pooled = jnp.dot(acts, p_ref[...], preferred_element_type=jnp.float32)
    o_ref[...] = pooled.astype(o_ref.dtype)


# ------------------------------ Python wrapper ------------------------------ #

def conv_block_forward(x, weight, bias, *,
                       conv_stride=(1, 1), conv_padding=(0, 0),
                       pool_kernel=(2, 2), dropout=0.0):
    """ConvBlock forward (NCHW in / NCHW out), matching the PyTorch module (eval/p=0)."""
    N, Cin, H, W = x.shape
    Cout, _, kh, kw = weight.shape
    sh, sw = conv_stride
    cph, cpw = conv_padding
    pkh, pkw = pool_kernel

    OH = (H + 2 * cph - kh) // sh + 1
    OW = (W + 2 * cpw - kw) // sw + 1
    PH, PW = OH // pkh, OW // pkw              # AvgPool2d floor semantics
    assert PH > 0 and PW > 0, "pooled output is empty"
    OWc = PW * pkw                             # conv columns actually consumed by pool
    Wp = W + 2 * cpw

    # Dropout with p == 0 (or eval mode) is the identity.
    # TODO(synk): training-mode dropout (p > 0) would use pltpu.prng_seed +
    # pltpu.stateful_bernoulli inside the kernel.
    del dropout

    # ---- blocking: whole pooled rows per block; cdiv (pad + slice) for any PH ----
    tile_ph = max(1, min(PH, 2048 // max(1, pkh * sh * Wp)))   # bound LHS lane length
    pb_blocks = pl.cdiv(PH, tile_ph)
    tile_oh = tile_ph * pkh                                    # conv rows per block
    rows_in = (tile_oh - 1) * sh + kh                          # input rows per block
    mwide = (tile_oh - 1) * sh * Wp + (OWc - 1) * sw + 1       # LHS columns
    qp = tile_ph * PW

    # ---- wrapper-side layout glue (single cheap pass; NO kh*kw-x HBM im2col) ----
    need_rows = (pb_blocks - 1) * tile_oh * sh + rows_in
    pad_bot = max(0, need_rows - (H + 2 * cph))
    xp = jnp.pad(x, ((0, 0), (0, 0), (cph, cph + pad_bot), (cpw, cpw)))
    # Per-block row windows (overlap = kh - sh rows), channels on sublanes, fused
    # (row, col) spatial index on lanes:  x_win[n, pb, cin, r*Wp + w]
    slabs = [lax.slice_in_dim(xp, pb * tile_oh * sh, pb * tile_oh * sh + rows_in, axis=2)
             for pb in range(pb_blocks)]
    x_win = jnp.stack(slabs, axis=1).reshape(N, pb_blocks, Cin, rows_in * Wp)

    # Weights -> (Cout, K) with K ordered (i, j, cin); bias -> (Cout, 1).
    w2 = jnp.transpose(weight, (0, 2, 3, 1)).reshape(Cout, kh * kw * Cin)
    b2 = bias.reshape(Cout, 1)

    # Constant pooling / masking matrix (static shapes -> built once with numpy).
    m = np.arange(mwide)
    rr, cc = m // Wp, m % Wp
    r, c = rr // sh, cc // sw
    valid = (rr % sh == 0) & (cc % sw == 0) & (r < tile_oh) & (c < OWc)
    q = (r // pkh) * PW + (c // pkw)
    pool_np = np.zeros((mwide, qp), np.float32)
    pool_np[m[valid], q[valid]] = 1.0 / (pkh * pkw)
    pool_mat = jnp.asarray(pool_np)

    kernel = functools.partial(_conv_relu_pool_kernel,
                               cin=Cin, kh=kh, kw=kw, wp=Wp, mwide=mwide)

    out = pl.pallas_call(
        kernel,
        out_shape=jax.ShapeDtypeStruct((N, pb_blocks, Cout, qp), x.dtype),
        grid=(N, pb_blocks),
        in_specs=[
            # Only this block's row window is resident (scales to large images).
            pl.BlockSpec((None, None, Cin, rows_in * Wp), lambda n, pb: (n, pb, 0, 0)),
            # Weights / bias / pool matrix: constant blocks, resident across the grid.
            pl.BlockSpec((Cout, kh * kw * Cin), lambda n, pb: (0, 0)),
            pl.BlockSpec((Cout, 1), lambda n, pb: (0, 0)),
            pl.BlockSpec((mwide, qp), lambda n, pb: (0, 0)),
        ],
        out_specs=pl.BlockSpec((None, None, Cout, qp), lambda n, pb: (n, pb, 0, 0)),
        scratch_shapes=[pltpu.VMEM((kh * kw * Cin, mwide), x.dtype)],
        compiler_params=pltpu.CompilerParams(
            dimension_semantics=("parallel", "parallel"),
            vmem_limit_bytes=32 * 1024 * 1024),
    )(x_win, w2, b2, pool_mat)

    # (N, pb, Cout, tile_ph*PW) -> NCHW (N, Cout, PH, PW), dropping the cdiv pad rows.
    out = out.reshape(N, pb_blocks, Cout, tile_ph, PW)
    out = jnp.transpose(out, (0, 2, 1, 3, 4)).reshape(N, Cout, pb_blocks * tile_ph, PW)
    return out[:, :, :PH, :]


# ----------------------------------- main ----------------------------------- #

if __name__ == "__main__":
    # ConvBlock(channels_in=4, channels_out=8, conv_kernel_shape=(3,3),
    #           pool_kernel_shape=(2,2), stride=(1,1), padding=(0,0), dropout=0.0)
    N, Cin, H, W = 2, 4, 16, 16
    Cout, kh, kw = 8, 3, 3
    pool = (2, 2)

    key = jax.random.PRNGKey(0)
    kx, kw_key, kb_key = jax.random.split(key, 3)

    x = jax.random.normal(kx, (N, Cin, H, W), dtype=jnp.float32)

    # kaiming_uniform_ (a=0, fan_in mode): bound = sqrt(6 / fan_in)
    fan_in = Cin * kh * kw
    w_bound = math.sqrt(6.0 / fan_in)
    weight = jax.random.uniform(kw_key, (Cout, Cin, kh, kw),
                                minval=-w_bound, maxval=w_bound, dtype=jnp.float32)
    # default Conv2d bias init: U(-1/sqrt(fan_in), 1/sqrt(fan_in))
    b_bound = 1.0 / math.sqrt(fan_in)
    bias = jax.random.uniform(kb_key, (Cout,), minval=-b_bound, maxval=b_bound,
                              dtype=jnp.float32)

    fwd = jax.jit(functools.partial(conv_block_forward,
                                    conv_stride=(1, 1), conv_padding=(0, 0),
                                    pool_kernel=pool, dropout=0.0))
    out = jax.block_until_ready(fwd(x, weight, bias))

    # Independent plain-XLA reference.
    conv_ref = lax.conv_general_dilated(
        x, weight, window_strides=(1, 1), padding=[(0, 0), (0, 0)],
        dimension_numbers=("NCHW", "OIHW", "NCHW"),
        precision=lax.Precision.HIGHEST) + bias.reshape(1, -1, 1, 1)
    relu_ref = jnp.maximum(conv_ref, 0.0)
    pool_ref = lax.reduce_window(relu_ref, 0.0, lax.add,
                                 (1, 1, pool[0], pool[1]),
                                 (1, 1, pool[0], pool[1]), "VALID") / (pool[0] * pool[1])

    assert out.shape == (N, Cout, (H - kh + 1) // pool[0], (W - kw + 1) // pool[1])
    np.testing.assert_allclose(np.asarray(out), np.asarray(pool_ref),
                               rtol=1e-4, atol=1e-4)
    print("KERNEL_OK")
</pallas_src>

<mosaic_0001>
module attributes {stable_mosaic.version = 11 : i64} {
  func.func @_conv_relu_pool_kernel(%arg0: i32, %arg1: i32, %arg2: memref<1x1x4x256xf32, #tpu.memory_space<vmem>>, %arg3: memref<8x36xf32, #tpu.memory_space<vmem>>, %arg4: memref<8x1xf32, #tpu.memory_space<vmem>>, %arg5: memref<222x49xf32, #tpu.memory_space<vmem>>, %arg6: memref<1x1x8x49xf32, #tpu.memory_space<vmem>>, %arg7: memref<36x222xf32, #tpu.memory_space<vmem>>) attributes {dimension_semantics = [#tpu.dimension_semantics<parallel>, #tpu.dimension_semantics<parallel>], iteration_bounds = array<i64: 2, 1>, scalar_prefetch = 0 : i64, scratch_operands = 1 : i64, tpu.core_type = #tpu.core_type<tc>, window_params = [{transform_indices = @transform_0, window_bounds = array<i64: 1, 1, 4, 256>}, {pipeline_mode = #tpu.pipeline_mode<synchronous>, transform_indices = @transform_1, window_bounds = array<i64: 8, 36>}, {pipeline_mode = #tpu.pipeline_mode<synchronous>, transform_indices = @transform_2, window_bounds = array<i64: 8, 1>}, {pipeline_mode = #tpu.pipeline_mode<synchronous>, transform_indices = @transform_3, window_bounds = array<i64: 222, 49>}, {transform_indices = @transform_4, window_bounds = array<i64: 1, 1, 8, 49>}]} {
    %c0 = arith.constant 0 : index
    %c0_0 = arith.constant 0 : index
    %c0_1 = arith.constant 0 : index
    %c0_2 = arith.constant 0 : index
    %0 = vector.load %arg2[%c0, %c0_0, %c0_1, %c0_2] : memref<1x1x4x256xf32, #tpu.memory_space<vmem>>, vector<1x1x4x222xf32>
    %1 = vector.shape_cast %0 : vector<1x1x4x222xf32> to vector<4x222xf32>
    %c0_3 = arith.constant 0 : index
    %c0_4 = arith.constant 0 : index
    %2 = vector.load %arg7[%c0_3, %c0_4] : memref<36x222xf32, #tpu.memory_space<vmem>>, vector<4x222xf32>
    tpu.vector_store %arg7[%c0_3, %c0_4], %1 {strides = array<i32>} : memref<36x222xf32, #tpu.memory_space<vmem>>, vector<4x222xf32>,
    %c0_5 = arith.constant 0 : index
    %c0_6 = arith.constant 0 : index
    %c0_7 = arith.constant 0 : index
    %c1 = arith.constant 1 : index
    %3 = vector.load %arg2[%c0_5, %c0_6, %c0_7, %c1] : memref<1x1x4x256xf32, #tpu.memory_space<vmem>>, vector<1x1x4x222xf32>
    %4 = vector.shape_cast %3 : vector<1x1x4x222xf32> to vector<4x222xf32>
    %c4 = arith.constant 4 : index
    %c0_8 = arith.constant 0 : index
    %5 = vector.load %arg7[%c4, %c0_8] : memref<36x222xf32, #tpu.memory_space<vmem>>, vector<4x222xf32>
    tpu.vector_store %arg7[%c4, %c0_8], %4 {strides = array<i32>} : memref<36x222xf32, #tpu.memory_space<vmem>>, vector<4x222xf32>,
    %c0_9 = arith.constant 0 : index
    %c0_10 = arith.constant 0 : index
    %c0_11 = arith.constant 0 : index
    %c2 = arith.constant 2 : index
    %6 = vector.load %arg2[%c0_9, %c0_10, %c0_11, %c2] : memref<1x1x4x256xf32, #tpu.memory_space<vmem>>, vector<1x1x4x222xf32>
    %7 = vector.shape_cast %6 : vector<1x1x4x222xf32> to vector<4x222xf32>
    %c8 = arith.constant 8 : index
    %c0_12 = arith.constant 0 : index
    %8 = vector.load %arg7[%c8, %c0_12] : memref<36x222xf32, #tpu.memory_space<vmem>>, vector<4x222xf32>
    tpu.vector_store %arg7[%c8, %c0_12], %7 {strides = array<i32>} : memref<36x222xf32, #tpu.memory_space<vmem>>, vector<4x222xf32>,
    %c0_13 = arith.constant 0 : index
    %c0_14 = arith.constant 0 : index
    %c0_15 = arith.constant 0 : index
    %c16 = arith.constant 16 : index
    %9 = vector.load %arg2[%c0_13, %c0_14, %c0_15, %c16] : memref<1x1x4x256xf32, #tpu.memory_space<vmem>>, vector<1x1x4x222xf32>
    %10 = vector.shape_cast %9 : vector<1x1x4x222xf32> to vector<4x222xf32>
    %c12 = arith.constant 12 : index
    %c0_16 = arith.constant 0 : index
    %11 = vector.load %arg7[%c12, %c0_16] : memref<36x222xf32, #tpu.memory_space<vmem>>, vector<4x222xf32>
    tpu.vector_store %arg7[%c12, %c0_16], %10 {strides = array<i32>} : memref<36x222xf32, #tpu.memory_space<vmem>>, vector<4x222xf32>,
    %c0_17 = arith.constant 0 : index
    %c0_18 = arith.constant 0 : index
    %c0_19 = arith.constant 0 : index
    %c17 = arith.constant 17 : index
    %12 = vector.load %arg2[%c0_17, %c0_18, %c0_19, %c17] : memref<1x1x4x256xf32, #tpu.memory_space<vmem>>, vector<1x1x4x222xf32>
    %13 = vector.shape_cast %12 : vector<1x1x4x222xf32> to vector<4x222xf32>
    %c16_20 = arith.constant 16 : index
    %c0_21 = arith.constant 0 : index
    %14 = vector.load %arg7[%c16_20, %c0_21] : memref<36x222xf32, #tpu.memory_space<vmem>>, vector<4x222xf32>
    tpu.vector_store %arg7[%c16_20, %c0_21], %13 {strides = array<i32>} : memref<36x222xf32, #tpu.memory_space<vmem>>, vector<4x222xf32>,
    %c0_22 = arith.constant 0 : index
    %c0_23 = arith.constant 0 : index
    %c0_24 = arith.constant 0 : index
    %c18 = arith.constant 18 : index
    %15 = vector.load %arg2[%c0_22, %c0_23, %c0_24, %c18] : memref<1x1x4x256xf32, #tpu.memory_space<vmem>>, vector<1x1x4x222xf32>
    %16 = vector.shape_cast %15 : vector<1x1x4x222xf32> to vector<4x222xf32>
    %c20 = arith.constant 20 : index
    %c0_25 = arith.constant 0 : index
    %17 = vector.load %arg7[%c20, %c0_25] : memref<36x222xf32, #tpu.memory_space<vmem>>, vector<4x222xf32>
    tpu.vector_store %arg7[%c20, %c0_25], %16 {strides = array<i32>} : memref<36x222xf32, #tpu.memory_space<vmem>>, vector<4x222xf32>,
    %c0_26 = arith.constant 0 : index
    %c0_27 = arith.constant 0 : index
    %c0_28 = arith.constant 0 : index
    %c32 = arith.constant 32 : index
    %18 = vector.load %arg2[%c0_26, %c0_27, %c0_28, %c32] : memref<1x1x4x256xf32, #tpu.memory_space<vmem>>, vector<1x1x4x222xf32>
    %19 = vector.shape_cast %18 : vector<1x1x4x222xf32> to vector<4x222xf32>
    %c24 = arith.constant 24 : index
    %c0_29 = arith.constant 0 : index
    %20 = vector.load %arg7[%c24, %c0_29] : memref<36x222xf32, #tpu.memory_space<vmem>>, vector<4x222xf32>
    tpu.vector_store %arg7[%c24, %c0_29], %19 {strides = array<i32>} : memref<36x222xf32, #tpu.memory_space<vmem>>, vector<4x222xf32>,
    %c0_30 = arith.constant 0 : index
    %c0_31 = arith.constant 0 : index
    %c0_32 = arith.constant 0 : index
    %c33 = arith.constant 33 : index
    %21 = vector.load %arg2[%c0_30, %c0_31, %c0_32, %c33] : memref<1x1x4x256xf32, #tpu.memory_space<vmem>>, vector<1x1x4x222xf32>
    %22 = vector.shape_cast %21 : vector<1x1x4x222xf32> to vector<4x222xf32>
    %c28 = arith.constant 28 : index
    %c0_33 = arith.constant 0 : index
    %23 = vector.load %arg7[%c28, %c0_33] : memref<36x222xf32, #tpu.memory_space<vmem>>, vector<4x222xf32>
    tpu.vector_store %arg7[%c28, %c0_33], %22 {strides = array<i32>} : memref<36x222xf32, #tpu.memory_space<vmem>>, vector<4x222xf32>,
    %c0_34 = arith.constant 0 : index
    %c0_35 = arith.constant 0 : index
    %c0_36 = arith.constant 0 : index
    %c34 = arith.constant 34 : index
    %24 = vector.load %arg2[%c0_34, %c0_35, %c0_36, %c34] : memref<1x1x4x256xf32, #tpu.memory_space<vmem>>, vector<1x1x4x222xf32>
    %25 = vector.shape_cast %24 : vector<1x1x4x222xf32> to vector<4x222xf32>
    %c32_37 = arith.constant 32 : index
    %c0_38 = arith.constant 0 : index
    %26 = vector.load %arg7[%c32_37, %c0_38] : memref<36x222xf32, #tpu.memory_space<vmem>>, vector<4x222xf32>
    tpu.vector_store %arg7[%c32_37, %c0_38], %25 {strides = array<i32>} : memref<36x222xf32, #tpu.memory_space<vmem>>, vector<4x222xf32>,
    %c0_39 = arith.constant 0 : index
    %c0_40 = arith.constant 0 : index
    %27 = vector.load %arg3[%c0_39, %c0_40] : memref<8x36xf32, #tpu.memory_space<vmem>>, vector<8x36xf32>
    %c0_41 = arith.constant 0 : index
    %c0_42 = arith.constant 0 : index
    %28 = vector.load %arg7[%c0_41, %c0_42] : memref<36x222xf32, #tpu.memory_space<vmem>>, vector<36x222xf32>
    %cst = arith.constant dense<0.000000e+00> : vector<8x222xf32>
    %29 = tpu.matmul %27, %28, %cst {dimension_numbers = #tpu.dot_dimension_numbers<[1], [0], [0], [1], [0, 0, 1, 1], [], []>} : vector<8x36xf32>, vector<36x222xf32>, vector<8x222xf32> -> vector<8x222xf32>
    %c0_43 = arith.constant 0 : index
    %c0_44 = arith.constant 0 : index
    %30 = vector.load %arg4[%c0_43, %c0_44] : memref<8x1xf32, #tpu.memory_space<vmem>>, vector<8x1xf32>
    %31 = vector.broadcast %30 : vector<8x1xf32> to vector<8x222xf32>
    %32 = arith.addf %29, %31 : vector<8x222xf32>
    %cst_45 = arith.constant 0.000000e+00 : f32
    %33 = vector.broadcast %cst_45 : f32 to vector<8x222xf32>
    %34 = arith.maximumf %32, %33 : vector<8x222xf32>
    %c0_46 = arith.constant 0 : index
    %c0_47 = arith.constant 0 : index
    %35 = vector.load %arg5[%c0_46, %c0_47] : memref<222x49xf32, #tpu.memory_space<vmem>>, vector<222x49xf32>
    %cst_48 = arith.constant dense<0.000000e+00> : vector<8x49xf32>
    %36 = tpu.matmul %34, %35, %cst_48 {dimension_numbers = #tpu.dot_dimension_numbers<[1], [0], [0], [1], [0, 0, 1, 1], [], []>} : vector<8x222xf32>, vector<222x49xf32>, vector<8x49xf32> -> vector<8x49xf32>
    %c0_49 = arith.constant 0 : index
    %c0_50 = arith.constant 0 : index
    %c0_51 = arith.constant 0 : index
    %c0_52 = arith.constant 0 : index
    %37 = vector.load %arg6[%c0_49, %c0_50, %c0_51, %c0_52] : memref<1x1x8x49xf32, #tpu.memory_space<vmem>>, vector<1x1x8x49xf32>
    %38 = vector.shape_cast %37 : vector<1x1x8x49xf32> to vector<8x49xf32>
    %39 = vector.shape_cast %36 : vector<8x49xf32> to vector<1x1x8x49xf32>
    tpu.vector_store %arg6[%c0_49, %c0_50, %c0_51, %c0_52], %39 {strides = array<i32>} : memref<1x1x8x49xf32, #tpu.memory_space<vmem>>, vector<1x1x8x49xf32>,
    return
  }
  func.func @transform_0(%arg0: i32, %arg1: i32) -> (i32, i32, i32, i32) {
    %c0_i32 = arith.constant 0 : i32
    %c0_i32_0 = arith.constant 0 : i32
    %c0_i32_1 = arith.constant 0 : i32
    return %arg0, %arg1, %c0_i32, %c0_i32_0 : i32, i32, i32, i32
  }
  func.func @transform_1(%arg0: i32, %arg1: i32) -> (i32, i32) {
    %c0_i32 = arith.constant 0 : i32
    %c0_i32_0 = arith.constant 0 : i32
    %c0_i32_1 = arith.constant 0 : i32
    return %c0_i32, %c0_i32_0 : i32, i32
  }
  func.func @transform_2(%arg0: i32, %arg1: i32) -> (i32, i32) {
    %c0_i32 = arith.constant 0 : i32
    %c0_i32_0 = arith.constant 0 : i32
    %c0_i32_1 = arith.constant 0 : i32
    return %c0_i32, %c0_i32_0 : i32, i32
  }
  func.func @transform_3(%arg0: i32, %arg1: i32) -> (i32, i32) {
    %c0_i32 = arith.constant 0 : i32
    %c0_i32_0 = arith.constant 0 : i32
    %c0_i32_1 = arith.constant 0 : i32
    return %c0_i32, %c0_i32_0 : i32, i32
  }
  func.func @transform_4(%arg0: i32, %arg1: i32) -> (i32, i32, i32, i32) {
    %c0_i32 = arith.constant 0 : i32
    %c0_i32_0 = arith.constant 0 : i32
    %c0_i32_1 = arith.constant 0 : i32
    return %arg0, %arg1, %c0_i32, %c0_i32_0 : i32, i32, i32, i32
  }
}

</mosaic_0001>

<llo_original>
// kernel: conv_block_forward.1
$region0: #{conv_block_forward.1}
  #allocation0 [shape = 'u32[]', space=smem, size = 0x4, offset = 0x4, fixed_abs, tag = 'smem constant byte address 0x4 - core index']
  #allocation1 [shape = 'u32[144,128]{1,0:T(1,128)}', space=vmem, size = 0x12000, scoped, tag = 'internal scratch']
  #allocation2 [shape = 'f32[36,222]{1,0:T(8,128)}', space=vmem, size = 0xa000, scoped, tag = 'scratch operand']
  %s0 = inlined_call_operand.vmem [shape: f32[2,1,4,256], index: 0, kind: input, shape index: {}]
  %s1 = inlined_call_operand.vmem [shape: f32[8,36], index: 1, kind: input, shape index: {}]
  %s2 = inlined_call_operand.vmem [shape: f32[8,1], index: 2, kind: input, shape index: {}]
  %s3 = inlined_call_operand.vmem [shape: f32[222,49], index: 3, kind: input, shape index: {}]
  %s4 = inlined_call_operand.vmem [shape: f32[2,1,8,49], index: 4, kind: output, shape index: {}]
  %s5 = sld [smem:[#allocation0]]
  $region49: #{conv_block_forward.1} parent=0
    _
  %s7 = ssub.s32 1, %s5
  %s8 = scalar_select 0, %s7, %s5
  loop: start=0, step=1, limit=4
  $region2: #{conv_block_forward.1} parent=0 // loop_pre_header
    _
  $region3: #{conv_block_forward.1} parent=0 // loop_header
    %s10 = sphi 0, %s14
    %p11 = scmp.ge.s32.totalorder %s10, 4
    %s17 = sphi 0, %s29
    %s18 = sphi 0, %s25
    %s19 = sphi 0, %s17
    %s20 = sphi 0, %s18
    %s21 = sphi 0, %s19
    %s22 = sphi 0, %s20
    %s34 = sphi 0, %s36
    %s37 = sphi 0, %s34
    %s38 = sphi 0, %s37
    %s54 = sphi 0, %s38
    %s58 = sphi 0, %s58
    %s60 = sphi 0, %s58
    %s61 = sphi 0, %s60
    %s75 = sphi 0, %s61
    %s79 = sphi 0, %s79
    %s81 = sphi 0, %s79
    %s82 = sphi 0, %s81
    %s96 = sphi 0, %s82
    %s100 = sphi 0, %s100
    %s102 = sphi 0, %s100
    %s103 = sphi 0, %s102
    %s117 = sphi 0, %s103
    %s125 = sphi 0, %s127
    %s128 = sphi 0, %s125
    %s129 = sphi 0, %s128
    %s145 = sphi 0, %s129
  $region4: #{conv_block_forward.1} parent=0 // loop_header_branch
    %13 = sbr.rel (%p11) target = $region8
  $region5: #{conv_block_forward.1} parent=0 // loop_body
    %s15 = ssub.s32 %s10, 1
    %s16 = ssub.s32 %s10, 2
    %s23 = sadd.s32 1, %s18
    %p24 = scmp.ge.s32.totalorder %s23, 1
    %s25 = scalar_select %p24, 0, %s23
    %s26 = sadd.s32 1, %s17
    %s27 = scalar_select %p24, %s26, %s17
    %p28 = scmp.ge.s32.totalorder %s27, 2
    %s29 = scalar_select %p28, 0, %s27
    %s30 = ssub.s32 %s17, %s29
    %s31 = ssub.s32 %s18, %s25
    %s32 = sor.u32 %s30, %s31
    %p33 = scmp.eq.s32.totalorder %s32, 0
    %s35 = sadd.s32 %s34, 1
    %s36 = scalar_select %p33, %s34, %s35
    %p39 = pneg %p33
    %p40 = scmp.eq.s32.totalorder %s10, 1
    %p41 = por %p39, %p40
    %p42 = scmp.ne.s32.totalorder %s34, %s37
    %p43 = scmp.eq.s32.totalorder %s10, 0
    %p44 = por %p42, %p43
    %p45 = scmp.ne.s32.totalorder %s34, %s37
    %p46 = scmp.eq.s32.totalorder %s15, 1
    %p47 = por %p45, %p46
    %p48 = scmp.ne.s32.totalorder %s37, %s38
    %p49 = scmp.eq.s32.totalorder %s15, 0
    %p50 = por %p48, %p49
    %p51 = scmp.ne.s32.totalorder %s37, %s38
    %p52 = scmp.eq.s32.totalorder %s16, 1
    %p53 = por %p51, %p52
    %p55 = scmp.ne.s32.totalorder %s38, %s54
    %p56 = scmp.eq.s32.totalorder %s16, 0
    %p57 = por %p55, %p56
    %s59 = sadd.s32 %s58, 1
    %p62 = scmp.eq.s32.totalorder %s10, 1
    %p63 = scmp.ne.s32.totalorder %s58, %s60
    %p64 = scmp.eq.s32.totalorder %s10, 0
    %p65 = por %p63, %p64
    %p66 = scmp.ne.s32.totalorder %s58, %s60
    %p67 = scmp.eq.s32.totalorder %s15, 1
    %p68 = por %p66, %p67
    %p69 = scmp.ne.s32.totalorder %s60, %s61
    %p70 = scmp.eq.s32.totalorder %s15, 0
    %p71 = por %p69, %p70
    %p72 = scmp.ne.s32.totalorder %s60, %s61
    %p73 = scmp.eq.s32.totalorder %s16, 1
    %p74 = por %p72, %p73
    %p76 = scmp.ne.s32.totalorder %s61, %s75
    %p77 = scmp.eq.s32.totalorder %s16, 0
    %p78 = por %p76, %p77
    %s80 = sadd.s32 %s79, 1
    %p83 = scmp.eq.s32.totalorder %s10, 1
    %p84 = scmp.ne.s32.totalorder %s79, %s81
    %p85 = scmp.eq.s32.totalorder %s10, 0
    %p86 = por %p84, %p85
    %p87 = scmp.ne.s32.totalorder %s79, %s81
    %p88 = scmp.eq.s32.totalorder %s15, 1
    %p89 = por %p87, %p88
    %p90 = scmp.ne.s32.totalorder %s81, %s82
    %p91 = scmp.eq.s32.totalorder %s15, 0
    %p92 = por %p90, %p91
    %p93 = scmp.ne.s32.totalorder %s81, %s82
    %p94 = scmp.eq.s32.totalorder %s16, 1
    %p95 = por %p93, %p94
    %p97 = scmp.ne.s32.totalorder %s82, %s96
    %p98 = scmp.eq.s32.totalorder %s16, 0
    %p99 = por %p97, %p98
    %s101 = sadd.s32 %s100, 1
    %p104 = scmp.eq.s32.totalorder %s10, 1
    %p105 = scmp.ne.s32.totalorder %s100, %s102
    %p106 = scmp.eq.s32.totalorder %s10, 0
    %p107 = por %p105, %p106
    %p108 = scmp.ne.s32.totalorder %s100, %s102
    %p109 = scmp.eq.s32.totalorder %s15, 1
    %p110 = por %p108, %p109
    %p111 = scmp.ne.s32.totalorder %s102, %s103
    %p112 = scmp.eq.s32.totalorder %s15, 0
    %p113 = por %p111, %p112
    %p114 = scmp.ne.s32.totalorder %s102, %s103
    %p115 = scmp.eq.s32.totalorder %s16, 1
    %p116 = por %p114, %p115
    %p118 = scmp.ne.s32.totalorder %s103, %s117
    %p119 = scmp.eq.s32.totalorder %s16, 0
    %p120 = por %p118, %p119
    %s121 = ssub.s32 %s17, %s29
    %s122 = ssub.s32 %s18, %s25
    %s123 = sor.u32 %s121, %s122
    %p124 = scmp.eq.s32.totalorder %s123, 0
    %s126 = sadd.s32 %s125, 1
    %s127 = scalar_select %p124, %s125, %s126
    %p130 = pneg %p124
    %p131 = scmp.eq.s32.totalorder %s10, 1
    %p132 = por %p130, %p131
    %p133 = scmp.ne.s32.totalorder %s125, %s128
    %p134 = scmp.eq.s32.totalorder %s10, 0
    %p135 = por %p133, %p134
    %p136 = scmp.ne.s32.totalorder %s125, %s128
    %p137 = scmp.eq.s32.totalorder %s15, 1
    %p138 = por %p136, %p137
    %p139 = scmp.ne.s32.totalorder %s128, %s129
    %p140 = scmp.eq.s32.totalorder %s15, 0
    %p141 = por %p139, %p140
    %p142 = scmp.ne.s32.totalorder %s128, %s129
    %p143 = scmp.eq.s32.totalorder %s16, 1
    %p144 = por %p142, %p143
    %p146 = scmp.ne.s32.totalorder %s129, %s145
    %p147 = scmp.eq.s32.totalorder %s16, 0
    %p148 = por %p146, %p147
    %p149 = scmp.le.s32.totalorder 1, %s10
    %p150 = scmp.lt.s32.totalorder %s10, 3
    %p151 = pnand %p149, %p150
    %p152 = pneg %p151
    // Predicated region
    $region9: #{conv_block_forward.1} parent=5 // pred_check
      _
    $region10: #{conv_block_forward.1} parent=5 // pred_check_branch
      %154 = sbr.rel (%p151) target = $region12
    $region11: #{conv_block_forward.1} parent=5 // pred_region
      %s155 = ssub.s32 %s10, 1
      // Predicated region
      $region13: #{conv_block_forward.1} parent=11 // pred_check
        %p156 = pneg %p71
      $region14: #{conv_block_forward.1} parent=11 // pred_check_branch
        %158 = sbr.rel (%p156) target = $region16
      $region15: #{conv_block_forward.1} parent=11 // pred_region
        _
      $region16: #{conv_block_forward.1} parent=11 // pred_fallthru
        _
      // Predicated region
      $region17: #{conv_block_forward.1} parent=11 // pred_check
        %p159 = pneg %p92
      $region18: #{conv_block_forward.1} parent=11 // pred_check_branch
        %161 = sbr.rel (%p159) target = $region20
      $region19: #{conv_block_forward.1} parent=11 // pred_region
        _
      $region20: #{conv_block_forward.1} parent=11 // pred_fallthru
        _
      // Predicated region
      $region21: #{conv_block_forward.1} parent=11 // pred_check
        %p162 = pneg %p113
      $region22: #{conv_block_forward.1} parent=11 // pred_check_branch
        %164 = sbr.rel (%p162) target = $region24
      $region23: #{conv_block_forward.1} parent=11 // pred_region
        _
      $region24: #{conv_block_forward.1} parent=11 // pred_fallthru
        _
    $region12: #{conv_block_forward.1} parent=5 // pred_fallthru
      _
    %p165 = scmp.lt.s32.totalorder %s10, 2
    // Predicated region
    $region25: #{conv_block_forward.1} parent=5 // pred_check
      %p166 = pneg %p165
    $region26: #{conv_block_forward.1} parent=5 // pred_check_branch
      %168 = sbr.rel (%p166) target = $region28
    $region27: #{conv_block_forward.1} parent=5 // pred_region
      // Predicated region
      $region29: #{conv_block_forward.1} parent=27 // pred_check
        %p169 = pneg %p44
      $region30: #{conv_block_forward.1} parent=27 // pred_check_branch
        %171 = sbr.rel (%p169) target = $region32
      $region31: #{conv_block_forward.1} parent=27 // pred_region
        %p172 = scmp.lt.s32.totalorder %s17, 1
        %s173 = scalar_select %p172, %s17, 1
        %p174 = scmp.lt.s32.totalorder %s18, 0
        %s175 = scalar_select %p174, %s18, 0
        %s176 = smul.addr %s175, 2
        %s177 = smul.addr %s173, 2
        %s178 = sadd.s32 %s176, %s177
        %s179 = smul.addr %s178, 4
        %s180 = scalar_lea.vmem %s0, %s179
      $region32: #{conv_block_forward.1} parent=27 // pred_fallthru
        _
    $region28: #{conv_block_forward.1} parent=5 // pred_fallthru
      _
    %p181 = scmp.le.s32.totalorder 1, %s10
    %p182 = scmp.lt.s32.totalorder %s10, 3
    %p183 = pnand %p181, %p182
    %p184 = pneg %p183
    // Predicated region
    $region33: #{conv_block_forward.1} parent=5 // pred_check
      _
    $region34: #{conv_block_forward.1} parent=5 // pred_check_branch
      %186 = sbr.rel (%p183) target = $region36
    $region35: #{conv_block_forward.1} parent=5 // pred_region
      %s187 = ssub.s32 %s10, 1
      %p188 = scmp.lt.s32.totalorder %s19, 1
      %s189 = scalar_select %p188, %s19, 1
      %p190 = scmp.lt.s32.totalorder %s20, 0
      %s191 = scalar_select %p190, %s20, 0
      %s192 = smul.addr %s191, 2
      %s193 = smul.addr %s189, 2
      %s194 = sadd.s32 %s192, %s193
      %s195 = smul.addr %s194, 4
      %s196 = scalar_lea.vmem %s0, %s195
      %p197 = pneg %p50
      %p198 = pneg %p47
      %p199 = pneg %p71
      %p200 = pneg %p68
      %p201 = pneg %p92
      %p202 = pneg %p89
      %p203 = pneg %p113
      %p204 = pneg %p110
      %p205 = pneg %p141
      %p206 = pneg %p138
      %p207 = scmp.lt.s32.totalorder %s19, 1
      %s208 = scalar_select %p207, %s19, 1
      %p209 = scmp.lt.s32.totalorder %s20, 0
      %s210 = scalar_select %p209, %s20, 0
      %s211 = sadd.s32 %s210, %s208
      %s212 = smul.addr %s211, 8
      %s213 = scalar_lea.vmem %s4, %s212
      %p214 = scmp.lt.s32.totalorder %s19, 1
      %s215 = scalar_select %p214, %s19, 1
      %p216 = scmp.lt.s32.totalorder %s20, 0
      %s217 = scalar_select %p216, %s20, 0
      %s218 = smul.addr %s217, 2
      %s219 = smul.addr %s215, 2
      %s220 = sadd.s32 %s218, %s219
      %s221 = smul.addr %s220, 4
      %s222 = scalar_lea.vmem %s0, %s221
      %p223 = scmp.lt.s32.totalorder %s19, 1
      %s224 = scalar_select %p223, %s19, 1
      %p225 = scmp.lt.s32.totalorder %s20, 0
      %s226 = scalar_select %p225, %s20, 0
      %s227 = sadd.s32 %s226, %s224
      %s228 = smul.addr %s227, 8
      %s229 = scalar_lea.vmem %s4, %s228
      %v230 = vld [vmem:[%s222] sm:$0xff]
      %v232 = vcombine.high %v230, %v230
      %234 = vst [vmem:[#allocation2] sm:$0xf] %v230
      %vm235 = vcmask 764928
      %236 = vst.msk [vmem:[#allocation2 + $0x8] sm:$0xf] %vm235, %v232
      %v237 = vld [vmem:[%s222] sm:$0xff]
      %v239 = vcombine.low %v237, %v237
      %240 = vrot.lane.b32.xlu0 %v239, 127
      %v241 = vpop.permute.xlu0 %240
      %242 = vrot.lane.b32.xlu0 %v237, 127
      %v243 = vpop.permute.xlu0 %242
      %vm244 = vcmask 1039360
      %v245 = vsel %vm244, %v241, %v243
      %248 = vst [vmem:[#allocation2] sm:$0xf0] %v245
      %vm249 = vcmask 769028
      %250 = vst.msk [vmem:[#allocation2 + $0x8] sm:$0xf0] %vm249, %v243
      %v251 = vld [vmem:[%s222] sm:$0xff]
      %v253 = vcombine.high %v251, %v251
      %254 = vrot.lane.b32.xlu0 %v251, 126
      %v255 = vpop.permute.xlu0 %254
      %256 = vrot.lane.b32.xlu0 %v253, 126
      %v257 = vpop.permute.xlu0 %256
      %vm258 = vcmask 1031168
      %v259 = vsel %vm258, %v255, %v257
      %262 = vst [vmem:[#allocation2 + $0x10] sm:$0xf] %v259
      %263 = vst.msk [vmem:[#allocation2 + $0x18] sm:$0xf] %vm235, %v257
      %v264 = vld [vmem:[%s222] sm:$0xff]
      %v266 = vcombine.low %v264, %v264
      %267 = vrot.lane.b32.xlu0 %v266, 112
      %v268 = vpop.permute.xlu0 %267
      %269 = vrot.lane.b32.xlu0 %v264, 112
      %v270 = vpop.permute.xlu0 %269
      %vm271 = vcmask 916480
      %v272 = vsel %vm271, %v268, %v270
      %275 = vst [vmem:[#allocation2 + $0x10] sm:$0xf0] %v272
      %276 = vst.msk [vmem:[#allocation2 + $0x18] sm:$0xf0] %vm249, %v270
      %v277 = vld [vmem:[%s222] sm:$0xff]
      %v279 = vcombine.high %v277, %v277
      %280 = vrot.lane.b32.xlu0 %v277, 111
      %v281 = vpop.permute.xlu0 %280
      %282 = vrot.lane.b32.xlu0 %v279, 111
      %v283 = vpop.permute.xlu0 %282
      %vm284 = vcmask 908288
      %v285 = vsel %vm284, %v281, %v283
      %288 = vst [vmem:[#allocation2 + $0x20] sm:$0xf] %v285
      %289 = vst.msk [vmem:[#allocation2 + $0x28] sm:$0xf] %vm235, %v283
      %v290 = vld [vmem:[%s222] sm:$0xff]
      %v292 = vcombine.low %v290, %v290
      %293 = vrot.lane.b32.xlu0 %v292, 110
      %v294 = vpop.permute.xlu0 %293
      %295 = vrot.lane.b32.xlu0 %v290, 110
      %v296 = vpop.permute.xlu0 %295
      %vm297 = vcmask 900096
      %v298 = vsel %vm297, %v294, %v296
      %301 = vst [vmem:[#allocation2 + $0x20] sm:$0xf0] %v298
      %302 = vst.msk [vmem:[#allocation2 + $0x28] sm:$0xf0] %vm249, %v296
      %v303 = vld [vmem:[%s222] sm:$0xff]
      %v305 = vcombine.high %v303, %v303
      %306 = vrot.lane.b32.xlu0 %v303, 96
      %v307 = vpop.permute.xlu0 %306
      %308 = vrot.lane.b32.xlu0 %v305, 96
      %v309 = vpop.permute.xlu0 %308
      %vm310 = vcmask 785408
      %v311 = vsel %vm310, %v307, %v309
      %314 = vst [vmem:[#allocation2 + $0x30] sm:$0xf] %v311
      %315 = vst.msk [vmem:[#allocation2 + $0x38] sm:$0xf] %vm235, %v309
      %v316 = vld [vmem:[%s222] sm:$0xff]
      %v318 = vcombine.low %v316, %v316
      %319 = vrot.lane.b32.xlu0 %v318, 95
      %v320 = vpop.permute.xlu0 %319
      %321 = vrot.lane.b32.xlu0 %v316, 95
      %v322 = vpop.permute.xlu0 %321
      %vm323 = vcmask 777216
      %v324 = vsel %vm323, %v320, %v322
      %327 = vst [vmem:[#allocation2 + $0x30] sm:$0xf0] %v324
      %328 = vst.msk [vmem:[#allocation2 + $0x38] sm:$0xf0] %vm249, %v322
      %v329 = vld [vmem:[%s222] sm:$0xff]
      %v331 = vcombine.high %v329, %v329
      %332 = vrot.lane.b32.xlu0 %v329, 94
      %v333 = vpop.permute.xlu0 %332
      %334 = vrot.lane.b32.xlu0 %v331, 94
      %v335 = vpop.permute.xlu0 %334
      %vm336 = vcmask 769024
      %v337 = vsel %vm336, %v333, %v335
      %340 = vst [vmem:[#allocation2 + $0x40] sm:$0xf] %v337
      %341 = vst.msk [vmem:[#allocation2 + $0x48] sm:$0xf] %vm235, %v335
      %v342 = vld [vmem:[%s1] sm:$0xff]
      %v343 = vld [vmem:[#allocation2] sm:$0xff]
      %v344 = vld [vmem:[#allocation2 + $0x8] sm:$0xff]
      %v345 = vld [vmem:[#allocation2 + $0x10] sm:$0xff]
      %v346 = vld [vmem:[#allocation2 + $0x18] sm:$0xff]
      %v347 = vld [vmem:[#allocation2 + $0x20] sm:$0xff]
      %v348 = vld [vmem:[#allocation2 + $0x28] sm:$0xff]
      %v349 = vld [vmem:[#allocation2 + $0x30] sm:$0xff]
      %v350 = vld [vmem:[#allocation2 + $0x38] sm:$0xff]
      %v351 = vld [vmem:[#allocation2 + $0x40] sm:$0xf]
      %v352 = vld [vmem:[#allocation2 + $0x48] sm:$0xf]
      %v353 = vld [vmem:[%s2] sm:$0xff]
      %355 = vset.pattern.permute.xlu0 0
      %356 = vperm.xlu0 %355, %v353
      %v357 = vpop.permute.xlu0 %356
      %vm359 = vcmask 293888
      %v361 = vsel %vm359, %v342, 0
      %vm363 = vcmask 1043456
      %v365 = vsel %vm363, %v351, 0
      %v368 = vsel %vm363, %v352, 0
      %370 = vmatprep.subr.mxu0 %v344
      %371 = vmatpush1.msra.mxu0 %v343
      %372 = vmatprep.subr.mxu0 %v346
      %373 = vmatpush1.msra.mxu0 %v345
      %374 = vmatprep.subr.mxu0 %v348
      %375 = vmatpush1.msra.mxu0 %v347
      %376 = vmatprep.subr.mxu0 %v350
      %377 = vmatpush1.msra.mxu0 %v349
      %378 = vmatprep.subr.mxu0 %v368
      %379 = vmatpush1.msra.mxu0 %v365
      %380 = vmatprep.subr.mxu0 0.0
      %381 = vmatpush1.msra.mxu0 0.0
      %382 = vmatprep.subr.mxu0 0.0
      %383 = vmatpush1.msra.mxu0 0.0
      %384 = vmatprep.subr.mxu0 0.0
      %385 = vmatpush1.msra.mxu0 0.0
      %386 = vmatprep.subr.mxu0 0.0
      %387 = vmatpush1.msra.mxu0 0.0
      %388 = vmatprep.subr.mxu0 0.0
      %389 = vmatpush1.msra.mxu0 0.0
      %390 = vmatprep.subr.mxu0 0.0
      %391 = vmatpush1.msra.mxu0 0.0
      %392 = vmatprep.subr.mxu0 0.0
      %393 = vmatpush1.msra.mxu0 0.0
      %394 = vmatprep.subr.mxu0 0.0
      %395 = vmatpush1.msra.mxu0 0.0
      %396 = vmatprep.subr.mxu0 0.0
      %397 = vmatpush1.msra.mxu0 0.0
      %398 = vmatprep.subr.mxu0 0.0
      %399 = vmatpush1.msra.mxu0 0.0
      %400 = vmatprep.subr.mxu0 0.0
      %401 = vmatpush1.msra.mxu0 0.0
      %402 = vmatprep.subr.mxu0 0.0
      %403 = vmatpush1.msra.mxu0 0.0
      %404 = vmatprep.subr.mxu0 0.0
      %405 = vmatpush1.msra.mxu0 0.0
      %406 = vmatprep.subr.mxu0 0.0
      %407 = vmatpush1.msra.mxu0 0.0
      %408 = vmatprep.subr.mxu0 0.0
      %409 = vmatpush1.msra.mxu0 0.0
      %410 = vmatprep.subr.mxu0 0.0
      %411 = vmatpush1.msra.mxu0 0.0
      %412 = vmatprep.subr.mxu0 0.0
      %413 = vmatpush1.msra.mxu0 0.0
      %414 = vmatprep.subr.mxu0 0.0
      %415 = vmatpush1.msra.mxu0 0.0
      %416 = vmatprep.subr.mxu0 0.0
      %417 = vmatpush1.msra.mxu0 0.0
      %418 = vmatprep.subr.mxu0 0.0
      %419 = vmatpush1.msra.mxu0 0.0
      %420 = vmatprep.subr.mxu0 0.0
      %421 = vmatpush1.msra.mxu0 0.0
      %422 = vmatprep.subr.mxu0 0.0
      %423 = vmatpush1.msra.mxu0 0.0
      %424 = vmatprep.subr.mxu0 0.0
      %425 = vmatpush1.msra.mxu0 0.0
      %426 = vmatprep.subr.mxu0 0.0
      %427 = vmatpush1.msra.mxu0 0.0
      %428 = vmatprep.subr.mxu0 0.0
      %429 = vmatpush1.msra.mxu0 0.0
      %430 = vmatprep.subr.mxu0 0.0
      %431 = vmatpush1.msra.mxu0 0.0
      %432 = vmatprep.subr.mxu0 0.0
      %433 = vmatpush1.msra.mxu0 0.0
      %434 = vmatprep.mubr.f32.mxu0 0.0
      %435 = vmatmul.mubr.f32.gmra.mrb[0].mxu0 %v361
      %v436 = vpop.f32.mrb[0].mxu0
      %v437 = vadd.f32 %v357, %v436
      %v438 = vpop.f32.mrb[0].mxu0
      %v439 = vadd.f32 %v357, %v438
      %440 = vdwg.mxu0
      %v441 = vmax.f32 %v437, 0.0
      %v442 = vmax.f32 %v439, 0.0
      %v443 = vld [vmem:[%s3] sm:$0xff]
      %v444 = vld [vmem:[%s3 + $0x8] sm:$0xff]
      %v445 = vld [vmem:[%s3 + $0x10] sm:$0xff]
      %v446 = vld [vmem:[%s3 + $0x18] sm:$0xff]
      %v447 = vld [vmem:[%s3 + $0x20] sm:$0xff]
      %v448 = vld [vmem:[%s3 + $0x28] sm:$0xff]
      %v449 = vld [vmem:[%s3 + $0x30] sm:$0xff]
      %v450 = vld [vmem:[%s3 + $0x38] sm:$0xff]
      %v451 = vld [vmem:[%s3 + $0x40] sm:$0xff]
      %v452 = vld [vmem:[%s3 + $0x48] sm:$0xff]
      %v453 = vld [vmem:[%s3 + $0x50] sm:$0xff]
      %v454 = vld [vmem:[%s3 + $0x58] sm:$0xff]
      %v455 = vld [vmem:[%s3 + $0x60] sm:$0xff]
      %v456 = vld [vmem:[%s3 + $0x68] sm:$0xff]
      %v457 = vld [vmem:[%s3 + $0x70] sm:$0xff]
      %v458 = vld [vmem:[%s3 + $0x78] sm:$0xff]
      %v459 = vld [vmem:[%s3 + $0x80] sm:$0xff]
      %v460 = vld [vmem:[%s3 + $0x88] sm:$0xff]
      %v461 = vld [vmem:[%s3 + $0x90] sm:$0xff]
      %v462 = vld [vmem:[%s3 + $0x98] sm:$0xff]
      %v463 = vld [vmem:[%s3 + $0xa0] sm:$0xff]
      %v464 = vld [vmem:[%s3 + $0xa8] sm:$0xff]
      %v465 = vld [vmem:[%s3 + $0xb0] sm:$0xff]
      %v466 = vld [vmem:[%s3 + $0xb8] sm:$0xff]
      %v467 = vld [vmem:[%s3 + $0xc0] sm:$0xff]
      %v468 = vld [vmem:[%s3 + $0xc8] sm:$0xff]
      %v469 = vld [vmem:[%s3 + $0xd0] sm:$0xff]
      %v470 = vld [vmem:[%s3 + $0xd8] sm:$0x3f]
      %v472 = vsel %vm336, %v442, 0
      %vm474 = vcmask 1045504
      %v476 = vsel %vm474, %v470, 0
      %478 = vmatprep.subr.mxu0 0.0
      %479 = vmatpush1.msra.mxu0 %v443
      %480 = vmatprep.subr.mxu0 0.0
      %481 = vmatpush1.msra.mxu0 %v444
      %482 = vmatprep.subr.mxu0 0.0
      %483 = vmatpush1.msra.mxu0 %v445
      %484 = vmatprep.subr.mxu0 0.0
      %485 = vmatpush1.msra.mxu0 %v446
      %486 = vmatprep.subr.mxu0 0.0
      %487 = vmatpush1.msra.mxu0 %v447
      %488 = vmatprep.subr.mxu0 0.0
      %489 = vmatpush1.msra.mxu0 %v448
      %490 = vmatprep.subr.mxu0 0.0
      %491 = vmatpush1.msra.mxu0 %v449
      %492 = vmatprep.subr.mxu0 0.0
      %493 = vmatpush1.msra.mxu0 %v450
      %494 = vmatprep.subr.mxu0 0.0
      %495 = vmatpush1.msra.mxu0 %v451
      %496 = vmatprep.subr.mxu0 0.0
      %497 = vmatpush1.msra.mxu0 %v452
      %498 = vmatprep.subr.mxu0 0.0
      %499 = vmatpush1.msra.mxu0 %v453
      %500 = vmatprep.subr.mxu0 0.0
      %501 = vmatpush1.msra.mxu0 %v454
      %502 = vmatprep.subr.mxu0 0.0
      %503 = vmatpush1.msra.mxu0 %v455
      %504 = vmatprep.subr.mxu0 0.0
      %505 = vmatpush1.msra.mxu0 %v456
      %506 = vmatprep.subr.mxu0 0.0
      %507 = vmatpush1.msra.mxu0 %v457
      %508 = vmatprep.subr.mxu0 0.0
      %509 = vmatpush1.msra.mxu0 %v458
      %510 = vmatprep.subr.mxu0 0.0
      %511 = vmatpush1.msra.mxu0 %v459
      %512 = vmatprep.subr.mxu0 0.0
      %513 = vmatpush1.msra.mxu0 %v460
      %514 = vmatprep.subr.mxu0 0.0
      %515 = vmatpush1.msra.mxu0 %v461
      %516 = vmatprep.subr.mxu0 0.0
      %517 = vmatpush1.msra.mxu0 %v462
      %518 = vmatprep.subr.mxu0 0.0
      %519 = vmatpush1.msra.mxu0 %v463
      %520 = vmatprep.subr.mxu0 0.0
      %521 = vmatpush1.msra.mxu0 %v464
      %522 = vmatprep.subr.mxu0 0.0
      %523 = vmatpush1.msra.mxu0 %v465
      %524 = vmatprep.subr.mxu0 0.0
      %525 = vmatpush1.msra.mxu0 %v466
      %526 = vmatprep.subr.mxu0 0.0
      %527 = vmatpush1.msra.mxu0 %v467
      %528 = vmatprep.subr.mxu0 0.0
      %529 = vmatpush1.msra.mxu0 %v468
      %530 = vmatprep.subr.mxu0 0.0
      %531 = vmatpush1.msra.mxu0 %v469
      %532 = vmatprep.subr.mxu0 0.0
      %533 = vmatpush1.msra.mxu0 %v476
      %534 = vmatprep.subr.mxu0 0.0
      %535 = vmatpush1.msra.mxu0 0.0
      %536 = vmatprep.subr.mxu0 0.0
      %537 = vmatpush1.msra.mxu0 0.0
      %538 = vmatprep.subr.mxu0 0.0
      %539 = vmatpush1.msra.mxu0 0.0
      %540 = vmatprep.subr.mxu0 0.0
      %541 = vmatpush1.msra.mxu0 0.0
      %542 = vmatprep.mubr.f32.mxu0 %v472
      %543 = vmatmul.mubr.f32.gmra.mrb[0].mxu0 %v441
      %v544 = vpop.f32.mrb[0].mxu0
      %v545 = vadd.f32 0.0, %v544
      %v546 = vpop.f32.mrb[0].mxu0
      %547 = vdwg.mxu0
      %vm548 = vcmask 400384
      %549 = vst.msk [vmem:[%s229] sm:$0xff] %vm548, %v545
      %p550 = scmp.lt.s32.totalorder %s19, 1
      %s551 = scalar_select %p550, %s19, 1
      %p552 = scmp.lt.s32.totalorder %s20, 0
      %s553 = scalar_select %p552, %s20, 0
      %s554 = sadd.s32 %s553, %s551
      %s555 = smul.addr %s554, 8
      %s556 = scalar_lea.vmem %s4, %s555
      // Predicated region
      $region37: #{conv_block_forward.1} parent=35 // pred_check
        %p557 = pneg %p138
      $region38: #{conv_block_forward.1} parent=35 // pred_check_branch
        %559 = sbr.rel (%p557) target = $region40
      $region39: #{conv_block_forward.1} parent=35 // pred_region
        _
      $region40: #{conv_block_forward.1} parent=35 // pred_fallthru
        _
    $region36: #{conv_block_forward.1} parent=5 // pred_fallthru
      _
    %p560 = scmp.le.s32.totalorder 2, %s10
    // Predicated region
    $region41: #{conv_block_forward.1} parent=5 // pred_check
      %p561 = pneg %p560
    $region42: #{conv_block_forward.1} parent=5 // pred_check_branch
      %563 = sbr.rel (%p561) target = $region44
    $region43: #{conv_block_forward.1} parent=5 // pred_region
      %s564 = ssub.s32 %s10, 2
      // Predicated region
      $region45: #{conv_block_forward.1} parent=43 // pred_check
        %p565 = pneg %p144
      $region46: #{conv_block_forward.1} parent=43 // pred_check_branch
        %567 = sbr.rel (%p565) target = $region48
      $region47: #{conv_block_forward.1} parent=43 // pred_region
        %p568 = scmp.lt.s32.totalorder %s21, 1
        %s569 = scalar_select %p568, %s21, 1
        %p570 = scmp.lt.s32.totalorder %s22, 0
        %s571 = scalar_select %p570, %s22, 0
        %s572 = sadd.s32 %s571, %s569
        %s573 = smul.addr %s572, 8
        %s574 = scalar_lea.vmem %s4, %s573
      $region48: #{conv_block_forward.1} parent=43 // pred_fallthru
        _
    $region44: #{conv_block_forward.1} parent=5 // pred_fallthru
      _
  $region6: #{conv_block_forward.1} parent=0 // loop_footer
    %s14 = sadd.s32 1, %s10
  $region7: #{conv_block_forward.1} parent=0 // loop_footer_branch
    %9 = sbr.rel target = $region3
  $region8: #{conv_block_forward.1} parent=0 // loop_exit
    _

</llo_original>
